<compile_context>
chip_gen: v6e
topology: v6e:2x2x1
jax: 0.10.0
libtpu: 0.0.40
codegen_flags: <defaults>
</compile_context>

<pallas_src>
import functools

import jax
import jax.numpy as jnp
from jax import lax
from jax.experimental import pallas as pl
from jax.experimental.pallas import tpu as pltpu


def _round_up(x, m):
    return ((x + m - 1) // m) * m


def _cdiv(a, b):
    return -(-a // b)


def mlp_kernel(ids_ref, w1e_ref, b1_ref, w2_ref, b2_ref, out_ref,
               *, seq_len, vocab_pad, compute_dtype):
    # ids_ref:  [TB, L]            int32  (token ids for this batch tile)
    # w1e_ref:  [L*V_pad, H_pad]   bf16   (embedding folded into Linear1, resident)
    # b1_ref:   [1, H_pad]         f32
    # w2_ref:   [H_pad, N]         bf16   (true narrow output dim N)
    # b2_ref:   [1, N]             f32
    # out_ref:  [TB, N]            f32    (no lane padding -> 64x less HBM write)
    ids = ids_ref[...]                                            # [TB, L]
    tb = ids.shape[0]

    # Fused embedding lookup + flatten + Linear1:
    # per-position one-hot bands are full 128-lane tiles, so concatenating them
    # along lanes is layout-trivial; the single matmul is K=L*V_pad, N=H_pad
    # lane-dense on the MXU. One-hot selection is exact in bf16.
    iota_v = lax.broadcasted_iota(jnp.int32, (tb, vocab_pad), 1)  # [TB, V_pad]
    bands = [(iota_v == ids[:, l:l + 1]).astype(compute_dtype)
             for l in range(seq_len)]
    onehot = jnp.concatenate(bands, axis=-1)                      # [TB, L*V_pad] bf16

    h = jnp.dot(onehot, w1e_ref[...],
                preferred_element_type=jnp.float32)               # [TB, H_pad] f32
    h = jnp.maximum(h + b1_ref[...], 0.0)
    # TODO(synk): dropout omitted (inference/eval-mode identity, matches model.eval()).

    logits = jnp.dot(h.astype(compute_dtype), w2_ref[...],
                     preferred_element_type=jnp.float32)          # [TB, N] f32
    out_ref[...] = (logits + b2_ref[...]).astype(out_ref.dtype)


def mlp_forward(x_ids, emb_table, w1, b1, w2, b2, *,
                batch_tile=2048, compute_dtype=jnp.bfloat16):
    """x_ids: [B, L] int; emb_table: [V, E]; w1: [L*E, H]; w2: [H, 2]."""
    B, L = x_ids.shape
    V, E = emb_table.shape
    F = L * E
    H = w1.shape[1]
    N = w2.shape[1]
    assert w1.shape[0] == F and w2.shape[0] == H

    H_pad = _round_up(max(H, 128), 128)
    V_pad = _round_up(max(V, 128), 128)

    # Fold the embedding table into Linear1 (f32 contraction, then bf16):
    #   flat @ w1 == sum_l onehot_l @ (table @ w1[l*E:(l+1)*E, :])
    emb_f32 = jnp.asarray(emb_table, jnp.float32)                  # [V, E]
    w1_f32 = jnp.asarray(w1, jnp.float32).reshape(L, E, H)         # [L, E, H]
    w1e = jnp.einsum('ve,leh->lvh', emb_f32, w1_f32)               # [L, V, H] f32
    w1e_p = (jnp.zeros((L, V_pad, H_pad), compute_dtype)
             .at[:, :V, :H].set(w1e.astype(compute_dtype))
             .reshape(L * V_pad, H_pad))

    b1_p = jnp.zeros((1, H_pad), jnp.float32).at[:, :H].set(
        jnp.asarray(b1, jnp.float32).reshape(1, H))
    # Keep the true (narrow) output dim: only K (hidden) is zero-padded.
    w2_p = jnp.zeros((H_pad, N), compute_dtype).at[:H, :].set(
        jnp.asarray(w2, compute_dtype))
    b2_p = jnp.asarray(b2, jnp.float32).reshape(1, N)

    # Adaptive batch tiling:
    #  * at least 2 tiles for moderate B (v7x dual-TC sharding via "parallel"),
    #  * per-tile padding <= 7 rows (avoid ~2x waste for awkward B),
    #  * TB multiple of 8 (sublane tiling).
    num_tiles = max(1, _cdiv(B, batch_tile))
    if num_tiles == 1 and B > 16:
        num_tiles = 2
    TB = _round_up(_cdiv(B, num_tiles), 8)
    B_pad = _round_up(B, TB)
    ids_p = jnp.zeros((B_pad, L), jnp.int32).at[:B].set(x_ids.astype(jnp.int32))

    kern = functools.partial(mlp_kernel, seq_len=L, vocab_pad=V_pad,
                             compute_dtype=compute_dtype)
    out = pl.pallas_call(
        kern,
        out_shape=jax.ShapeDtypeStruct((B_pad, N), jnp.float32),
        grid_spec=pltpu.PrefetchScalarGridSpec(
            num_scalar_prefetch=0,
            grid=(B_pad // TB,),
            in_specs=[
                pl.BlockSpec((TB, L), lambda i: (i, 0)),            # token ids
                pl.BlockSpec((L * V_pad, H_pad), lambda i: (0, 0)),  # folded emb+W1 (resident)
                pl.BlockSpec((1, H_pad), lambda i: (0, 0)),          # b1
                pl.BlockSpec((H_pad, N), lambda i: (0, 0)),          # w2 (narrow N)
                pl.BlockSpec((1, N), lambda i: (0, 0)),              # b2
            ],
            out_specs=pl.BlockSpec((TB, N), lambda i: (i, 0)),
        ),
        compiler_params=pltpu.CompilerParams(
            dimension_semantics=("parallel",),       # batch tiles shard across v7x's 2 TCs
            vmem_limit_bytes=48 * 1024 * 1024,       # fits TB=2048 comfortably on v7x (64 MiB phys)
        ),
    )(ids_p, w1e_p, b1_p, w2_p, b2_p)

    return out[:B]


def init_params(key, vocab_size, embed_dim, hidden, max_len):
    k_emb, k_w1, k_b1, k_w2, k_b2 = jax.random.split(key, 5)
    # nn.Embedding default: N(0,1), with padding_idx=0 row zeroed.
    emb = jax.random.normal(k_emb, (vocab_size, embed_dim), jnp.float32)
    emb = emb.at[0].set(0.0)
    # nn.Linear default: U(-1/sqrt(fan_in), 1/sqrt(fan_in)).
    fan1 = max_len * embed_dim
    w1 = jax.random.uniform(k_w1, (fan1, hidden), jnp.float32,
                            -1.0 / fan1 ** 0.5, 1.0 / fan1 ** 0.5)
    b1 = jax.random.uniform(k_b1, (1, hidden), jnp.float32,
                            -1.0 / fan1 ** 0.5, 1.0 / fan1 ** 0.5)
    w2 = jax.random.uniform(k_w2, (hidden, 2), jnp.float32,
                            -1.0 / hidden ** 0.5, 1.0 / hidden ** 0.5)
    b2 = jax.random.uniform(k_b2, (1, 2), jnp.float32,
                            -1.0 / hidden ** 0.5, 1.0 / hidden ** 0.5)
    return emb, w1, b1, w2, b2


if __name__ == "__main__":
    vocab_size, embed_dim, hidden, max_len = 50, 16, 32, 8
    batch = 2

    key = jax.random.PRNGKey(0)
    k_params, k_ids = jax.random.split(key)
    emb, w1, b1, w2, b2 = init_params(k_params, vocab_size, embed_dim,
                                      hidden, max_len)
    x_ids = jax.random.randint(k_ids, (batch, max_len), 0, vocab_size,
                               dtype=jnp.int32)

    out = mlp_forward(x_ids, emb, w1, b1, w2, b2)
    jax.block_until_ready(out)
    assert out.shape == (batch, 2) and out.dtype == jnp.float32

    # Pure-JAX f32 reference; loose tolerance accounts for bf16 MXU inputs.
    flat_ref = jnp.take(emb, x_ids, axis=0).reshape(batch, -1)
    ref = jnp.maximum(flat_ref @ w1 + b1, 0.0) @ w2 + b2
    max_err = float(jnp.max(jnp.abs(out - ref)))
    assert max_err < 5e-2, f"mismatch vs reference: {max_err}"

    print("KERNEL_OK")
</pallas_src>

<mosaic_0001>
module attributes {stable_mosaic.version = 11 : i64} {
  func.func @mlp_kernel(%arg0: i32, %arg1: memref<8x8xi32, #tpu.memory_space<vmem>>, %arg2: memref<1024x128xbf16, #tpu.memory_space<vmem>>, %arg3: memref<1x128xf32, #tpu.memory_space<vmem>>, %arg4: memref<128x2xbf16, #tpu.memory_space<vmem>>, %arg5: memref<1x2xf32, #tpu.memory_space<vmem>>, %arg6: memref<8x2xf32, #tpu.memory_space<vmem>>) attributes {dimension_semantics = [#tpu.dimension_semantics<parallel>], iteration_bounds = array<i64: 1>, scalar_prefetch = 0 : i64, scratch_operands = 0 : i64, tpu.core_type = #tpu.core_type<tc>, window_params = [{transform_indices = @transform_0, window_bounds = array<i64: 8, 8>}, {pipeline_mode = #tpu.pipeline_mode<synchronous>, transform_indices = @transform_1, window_bounds = array<i64: 1024, 128>}, {pipeline_mode = #tpu.pipeline_mode<synchronous>, transform_indices = @transform_2, window_bounds = array<i64: 1, 128>}, {pipeline_mode = #tpu.pipeline_mode<synchronous>, transform_indices = @transform_3, window_bounds = array<i64: 128, 2>}, {pipeline_mode = #tpu.pipeline_mode<synchronous>, transform_indices = @transform_4, window_bounds = array<i64: 1, 2>}, {transform_indices = @transform_5, window_bounds = array<i64: 8, 2>}]} {
    %c0 = arith.constant 0 : index
    %c0_0 = arith.constant 0 : index
    %0 = vector.load %arg1[%c0, %c0_0] : memref<8x8xi32, #tpu.memory_space<vmem>>, vector<8x8xi32>
    %1 = tpu.iota {dimensions = array<i32: 1>} : vector<8x128xi32>
    %2 = vector.extract_strided_slice %0 {offsets = [0, 0], sizes = [8, 1], strides = [1, 1]} : vector<8x8xi32> to vector<8x1xi32>
    %3 = vector.broadcast %2 : vector<8x1xi32> to vector<8x128xi32>
    %4 = arith.cmpi eq, %1, %3 : vector<8x128xi32>
    %5 = arith.extui %4 : vector<8x128xi1> to vector<8x128xi32>
    %6 = arith.sitofp %5 : vector<8x128xi32> to vector<8x128xf32>
    %7 = arith.truncf %6 : vector<8x128xf32> to vector<8x128xbf16>
    %8 = vector.extract_strided_slice %0 {offsets = [0, 1], sizes = [8, 1], strides = [1, 1]} : vector<8x8xi32> to vector<8x1xi32>
    %9 = vector.broadcast %8 : vector<8x1xi32> to vector<8x128xi32>
    %10 = arith.cmpi eq, %1, %9 : vector<8x128xi32>
    %11 = arith.extui %10 : vector<8x128xi1> to vector<8x128xi32>
    %12 = arith.sitofp %11 : vector<8x128xi32> to vector<8x128xf32>
    %13 = arith.truncf %12 : vector<8x128xf32> to vector<8x128xbf16>
    %14 = vector.extract_strided_slice %0 {offsets = [0, 2], sizes = [8, 1], strides = [1, 1]} : vector<8x8xi32> to vector<8x1xi32>
    %15 = vector.broadcast %14 : vector<8x1xi32> to vector<8x128xi32>
    %16 = arith.cmpi eq, %1, %15 : vector<8x128xi32>
    %17 = arith.extui %16 : vector<8x128xi1> to vector<8x128xi32>
    %18 = arith.sitofp %17 : vector<8x128xi32> to vector<8x128xf32>
    %19 = arith.truncf %18 : vector<8x128xf32> to vector<8x128xbf16>
    %20 = vector.extract_strided_slice %0 {offsets = [0, 3], sizes = [8, 1], strides = [1, 1]} : vector<8x8xi32> to vector<8x1xi32>
    %21 = vector.broadcast %20 : vector<8x1xi32> to vector<8x128xi32>
    %22 = arith.cmpi eq, %1, %21 : vector<8x128xi32>
    %23 = arith.extui %22 : vector<8x128xi1> to vector<8x128xi32>
    %24 = arith.sitofp %23 : vector<8x128xi32> to vector<8x128xf32>
    %25 = arith.truncf %24 : vector<8x128xf32> to vector<8x128xbf16>
    %26 = vector.extract_strided_slice %0 {offsets = [0, 4], sizes = [8, 1], strides = [1, 1]} : vector<8x8xi32> to vector<8x1xi32>
    %27 = vector.broadcast %26 : vector<8x1xi32> to vector<8x128xi32>
    %28 = arith.cmpi eq, %1, %27 : vector<8x128xi32>
    %29 = arith.extui %28 : vector<8x128xi1> to vector<8x128xi32>
    %30 = arith.sitofp %29 : vector<8x128xi32> to vector<8x128xf32>
    %31 = arith.truncf %30 : vector<8x128xf32> to vector<8x128xbf16>
    %32 = vector.extract_strided_slice %0 {offsets = [0, 5], sizes = [8, 1], strides = [1, 1]} : vector<8x8xi32> to vector<8x1xi32>
    %33 = vector.broadcast %32 : vector<8x1xi32> to vector<8x128xi32>
    %34 = arith.cmpi eq, %1, %33 : vector<8x128xi32>
    %35 = arith.extui %34 : vector<8x128xi1> to vector<8x128xi32>
    %36 = arith.sitofp %35 : vector<8x128xi32> to vector<8x128xf32>
    %37 = arith.truncf %36 : vector<8x128xf32> to vector<8x128xbf16>
    %38 = vector.extract_strided_slice %0 {offsets = [0, 6], sizes = [8, 1], strides = [1, 1]} : vector<8x8xi32> to vector<8x1xi32>
    %39 = vector.broadcast %38 : vector<8x1xi32> to vector<8x128xi32>
    %40 = arith.cmpi eq, %1, %39 : vector<8x128xi32>
    %41 = arith.extui %40 : vector<8x128xi1> to vector<8x128xi32>
    %42 = arith.sitofp %41 : vector<8x128xi32> to vector<8x128xf32>
    %43 = arith.truncf %42 : vector<8x128xf32> to vector<8x128xbf16>
    %44 = vector.extract_strided_slice %0 {offsets = [0, 7], sizes = [8, 1], strides = [1, 1]} : vector<8x8xi32> to vector<8x1xi32>
    %45 = vector.broadcast %44 : vector<8x1xi32> to vector<8x128xi32>
    %46 = arith.cmpi eq, %1, %45 : vector<8x128xi32>
    %47 = arith.extui %46 : vector<8x128xi1> to vector<8x128xi32>
    %48 = arith.sitofp %47 : vector<8x128xi32> to vector<8x128xf32>
    %49 = arith.truncf %48 : vector<8x128xf32> to vector<8x128xbf16>
    %50 = tpu.concatenate %7, %13, %19, %25, %31, %37, %43, %49 in 1 : vector<8x128xbf16>, vector<8x128xbf16>, vector<8x128xbf16>, vector<8x128xbf16>, vector<8x128xbf16>, vector<8x128xbf16>, vector<8x128xbf16>, vector<8x128xbf16> -> vector<8x1024xbf16>
    %c0_1 = arith.constant 0 : index
    %c0_2 = arith.constant 0 : index
    %51 = vector.load %arg2[%c0_1, %c0_2] : memref<1024x128xbf16, #tpu.memory_space<vmem>>, vector<1024x128xbf16>
    %cst = arith.constant dense<0.000000e+00> : vector<8x128xf32>
    %52 = tpu.matmul %50, %51, %cst {dimension_numbers = #tpu.dot_dimension_numbers<[1], [0], [0], [1], [0, 0, 1, 1], [], []>} : vector<8x1024xbf16>, vector<1024x128xbf16>, vector<8x128xf32> -> vector<8x128xf32>
    %c0_3 = arith.constant 0 : index
    %c0_4 = arith.constant 0 : index
    %53 = vector.load %arg3[%c0_3, %c0_4] : memref<1x128xf32, #tpu.memory_space<vmem>>, vector<1x128xf32>
    %54 = vector.broadcast %53 : vector<1x128xf32> to vector<8x128xf32>
    %55 = arith.addf %52, %54 : vector<8x128xf32>
    %cst_5 = arith.constant 0.000000e+00 : f32
    %56 = vector.broadcast %cst_5 : f32 to vector<8x128xf32>
    %57 = arith.maximumf %55, %56 : vector<8x128xf32>
    %58 = arith.truncf %57 : vector<8x128xf32> to vector<8x128xbf16>
    %c0_6 = arith.constant 0 : index
    %c0_7 = arith.constant 0 : index
    %59 = vector.load %arg4[%c0_6, %c0_7] : memref<128x2xbf16, #tpu.memory_space<vmem>>, vector<128x2xbf16>
    %cst_8 = arith.constant dense<0.000000e+00> : vector<8x2xf32>
    %60 = tpu.matmul %58, %59, %cst_8 {dimension_numbers = #tpu.dot_dimension_numbers<[1], [0], [0], [1], [0, 0, 1, 1], [], []>} : vector<8x128xbf16>, vector<128x2xbf16>, vector<8x2xf32> -> vector<8x2xf32>
    %c0_9 = arith.constant 0 : index
    %c0_10 = arith.constant 0 : index
    %61 = vector.load %arg5[%c0_9, %c0_10] : memref<1x2xf32, #tpu.memory_space<vmem>>, vector<1x2xf32>
    %62 = vector.broadcast %61 : vector<1x2xf32> to vector<8x2xf32>
    %63 = arith.addf %60, %62 : vector<8x2xf32>
    %c0_11 = arith.constant 0 : index
    %c0_12 = arith.constant 0 : index
    %64 = vector.load %arg6[%c0_11, %c0_12] : memref<8x2xf32, #tpu.memory_space<vmem>>, vector<8x2xf32>
    tpu.vector_store %arg6[%c0_11, %c0_12], %63 {strides = array<i32>} : memref<8x2xf32, #tpu.memory_space<vmem>>, vector<8x2xf32>,
    return
  }
  func.func @transform_0(%arg0: i32) -> (i32, i32) {
    %c0_i32 = arith.constant 0 : i32
    %c0_i32_0 = arith.constant 0 : i32
    return %arg0, %c0_i32 : i32, i32
  }
  func.func @transform_1(%arg0: i32) -> (i32, i32) {
    %c0_i32 = arith.constant 0 : i32
    %c0_i32_0 = arith.constant 0 : i32
    %c0_i32_1 = arith.constant 0 : i32
    return %c0_i32, %c0_i32_0 : i32, i32
  }
  func.func @transform_2(%arg0: i32) -> (i32, i32) {
    %c0_i32 = arith.constant 0 : i32
    %c0_i32_0 = arith.constant 0 : i32
    %c0_i32_1 = arith.constant 0 : i32
    return %c0_i32, %c0_i32_0 : i32, i32
  }
  func.func @transform_3(%arg0: i32) -> (i32, i32) {
    %c0_i32 = arith.constant 0 : i32
    %c0_i32_0 = arith.constant 0 : i32
    %c0_i32_1 = arith.constant 0 : i32
    return %c0_i32, %c0_i32_0 : i32, i32
  }
  func.func @transform_4(%arg0: i32) -> (i32, i32) {
    %c0_i32 = arith.constant 0 : i32
    %c0_i32_0 = arith.constant 0 : i32
    %c0_i32_1 = arith.constant 0 : i32
    return %c0_i32, %c0_i32_0 : i32, i32
  }
  func.func @transform_5(%arg0: i32) -> (i32, i32) {
    %c0_i32 = arith.constant 0 : i32
    %c0_i32_0 = arith.constant 0 : i32
    return %arg0, %c0_i32 : i32, i32
  }
}

</mosaic_0001>

<llo_original>
// kernel: tpu_custom_call.1
$region0: #{tpu_custom_call.1}
  #allocation0 [shape = 'u32[]', space=smem, size = 0x4, offset = 0x4, fixed_abs, tag = 'smem constant byte address 0x4 - core index']
  #allocation1 [shape = 'u32[144,128]{1,0:T(1,128)}', space=vmem, size = 0x12000, scoped, tag = 'internal scratch']
  %s0 = inlined_call_operand.vmem [shape: s32[8,8], index: 0, kind: input, shape index: {}]
  %s1 = inlined_call_operand.hbm [shape: bf16[1024,128], index: 1, kind: input, shape index: {}]
  %s2 = inlined_call_operand.vmem [shape: f32[1,128], index: 2, kind: input, shape index: {}]
  %s3 = inlined_call_operand.vmem [shape: bf16[128,2], index: 3, kind: input, shape index: {}]
  %s4 = inlined_call_operand.vmem [shape: f32[1,2], index: 4, kind: input, shape index: {}]
  %s5 = inlined_call_operand.vmem [shape: f32[8,2], index: 5, kind: output, shape index: {}]
  %s6 = sld [smem:[#allocation0]]
  $region34: #{tpu_custom_call.1} parent=0
    _
  %s8 = ssub.s32 1, %s6
  %s9 = scalar_select 0, %s8, %s6
  $region1: #{tpu_custom_call.1} parent=0
    #allocation2 [shape = 'u8[262144]{0}', space=vmem, size = 0x40000, scoped, tag = 'input window, operand 1, single buffered']
    #allocation3 [shape = 's32[1]{0}', space=sflag, size = 0x4, scoped, tag = 'scoped memory for tpu_custom_call.1']
    %10 = vsyncpa [#allocation3], 0
    // Predicated region
    $region2: #{tpu_custom_call.1} parent=1 // pred_check
      _
    $region3: #{tpu_custom_call.1} parent=1 // pred_check_branch
      %12 = sbr.rel (0) target = $region5
    $region4: #{tpu_custom_call.1} parent=1 // pred_region
      _
    $region5: #{tpu_custom_call.1} parent=1 // pred_fallthru
      _
    // Predicated region
    $region6: #{tpu_custom_call.1} parent=1 // pred_check
      _
    $region7: #{tpu_custom_call.1} parent=1 // pred_check_branch
      %14 = sbr.rel (0) target = $region9
    $region8: #{tpu_custom_call.1} parent=1 // pred_region
      %s16 = ssub.s32 8192, 8192
      %17 = vsyncadd [#allocation3], %s16
      %s18 = sshll.u32 [#allocation2], 4
      %s19 = int_to_ptr.vmem [resolvable:$true] %s18
      %24 = dma.hbm_to_vmem [thread:$0]  %s1, 8192, %s19, [#allocation3], 64, 64, 4
    $region9: #{tpu_custom_call.1} parent=1 // pred_fallthru
      _
    // Predicated region
    $region10: #{tpu_custom_call.1} parent=1 // pred_check
      _
    $region11: #{tpu_custom_call.1} parent=1 // pred_check_branch
      %26 = sbr.rel (0) target = $region13
    $region12: #{tpu_custom_call.1} parent=1 // pred_region
      _
    $region13: #{tpu_custom_call.1} parent=1 // pred_fallthru
      _
    // Predicated region
    $region14: #{tpu_custom_call.1} parent=1 // pred_check
      _
    $region15: #{tpu_custom_call.1} parent=1 // pred_check_branch
      %28 = sbr.rel (0) target = $region17
    $region16: #{tpu_custom_call.1} parent=1 // pred_region
      _
    $region17: #{tpu_custom_call.1} parent=1 // pred_fallthru
      _
    // Predicated region
    $region18: #{tpu_custom_call.1} parent=1 // pred_check
      _
    $region19: #{tpu_custom_call.1} parent=1 // pred_check_branch
      %30 = sbr.rel (0) target = $region21
    $region20: #{tpu_custom_call.1} parent=1 // pred_region
      _
    $region21: #{tpu_custom_call.1} parent=1 // pred_fallthru
      _
    // Predicated region
    $region22: #{tpu_custom_call.1} parent=1 // pred_check
      _
    $region23: #{tpu_custom_call.1} parent=1 // pred_check_branch
      %32 = sbr.rel (0) target = $region25
    $region24: #{tpu_custom_call.1} parent=1 // pred_region
      %33 = dma.done [#allocation3], 8192
    $region25: #{tpu_custom_call.1} parent=1 // pred_fallthru
      _
    %v35 = vld [vmem:[%s0] sm:$0xff]
    %v36 = vlaneseq
    %v37 = vand.u32 %v36, 127
    %38 = vset.pattern.permute.xlu0 0
    %39 = vperm.xlu0 %38, %v35
    %v40 = vpop.permute.xlu0 %39
    %vm41 = vcmp.eq.s32.totalorder %v37, %v40
    %v42 = vsel %vm41, 1, 0
    %v43 = vcvt.s32.f32 %v42
    %v44 = vpack.c.bf16 %v43, %v43
    %45 = vset.pattern.permute.xlu0 1
    %46 = vperm.xlu0 %45, %v35
    %v47 = vpop.permute.xlu0 %46
    %vm48 = vcmp.eq.s32.totalorder %v37, %v47
    %v49 = vsel %vm48, 1, 0
    %v50 = vcvt.s32.f32 %v49
    %v51 = vpack.c.bf16 %v50, %v50
    %52 = vset.pattern.permute.xlu0 2
    %53 = vperm.xlu0 %52, %v35
    %v54 = vpop.permute.xlu0 %53
    %vm55 = vcmp.eq.s32.totalorder %v37, %v54
    %v56 = vsel %vm55, 1, 0
    %v57 = vcvt.s32.f32 %v56
    %v58 = vpack.c.bf16 %v57, %v57
    %59 = vset.pattern.permute.xlu0 3
    %60 = vperm.xlu0 %59, %v35
    %v61 = vpop.permute.xlu0 %60
    %vm62 = vcmp.eq.s32.totalorder %v37, %v61
    %v63 = vsel %vm62, 1, 0
    %v64 = vcvt.s32.f32 %v63
    %v65 = vpack.c.bf16 %v64, %v64
    %66 = vset.pattern.permute.xlu0 4
    %67 = vperm.xlu0 %66, %v35
    %v68 = vpop.permute.xlu0 %67
    %vm69 = vcmp.eq.s32.totalorder %v37, %v68
    %v70 = vsel %vm69, 1, 0
    %v71 = vcvt.s32.f32 %v70
    %v72 = vpack.c.bf16 %v71, %v71
    %73 = vset.pattern.permute.xlu0 5
    %74 = vperm.xlu0 %73, %v35
    %v75 = vpop.permute.xlu0 %74
    %vm76 = vcmp.eq.s32.totalorder %v37, %v75
    %v77 = vsel %vm76, 1, 0
    %v78 = vcvt.s32.f32 %v77
    %v79 = vpack.c.bf16 %v78, %v78
    %80 = vset.pattern.permute.xlu0 6
    %81 = vperm.xlu0 %80, %v35
    %v82 = vpop.permute.xlu0 %81
    %vm83 = vcmp.eq.s32.totalorder %v37, %v82
    %v84 = vsel %vm83, 1, 0
    %v85 = vcvt.s32.f32 %v84
    %v86 = vpack.c.bf16 %v85, %v85
    %87 = vset.pattern.permute.xlu0 7
    %88 = vperm.xlu0 %87, %v35
    %v89 = vpop.permute.xlu0 %88
    %vm90 = vcmp.eq.s32.totalorder %v37, %v89
    %v91 = vsel %vm90, 1, 0
    %v92 = vcvt.s32.f32 %v91
    %v93 = vpack.c.bf16 %v92, %v92
    %v94 = vld [vmem:[#allocation2] sm:$0xf]
    %v95 = vld [vmem:[#allocation2 + $0x4] sm:$0xf]
    %v96 = vld [vmem:[#allocation2 + $0x8] sm:$0xf]
    %v97 = vld [vmem:[#allocation2 + $0xc] sm:$0xf]
    %v98 = vld [vmem:[#allocation2 + $0x10] sm:$0xf]
    %v99 = vld [vmem:[#allocation2 + $0x14] sm:$0xf]
    %v100 = vld [vmem:[#allocation2 + $0x18] sm:$0xf]
    %v101 = vld [vmem:[#allocation2 + $0x1c] sm:$0xf]
    %v102 = vld [vmem:[#allocation2 + $0x20] sm:$0xf]
    %v103 = vld [vmem:[#allocation2 + $0x24] sm:$0xf]
    %v104 = vld [vmem:[#allocation2 + $0x28] sm:$0xf]
    %v105 = vld [vmem:[#allocation2 + $0x2c] sm:$0xf]
    %v106 = vld [vmem:[#allocation2 + $0x30] sm:$0xf]
    %v107 = vld [vmem:[#allocation2 + $0x34] sm:$0xf]
    %v108 = vld [vmem:[#allocation2 + $0x38] sm:$0xf]
    %v109 = vld [vmem:[#allocation2 + $0x3c] sm:$0xf]
    %v110 = vld [vmem:[#allocation2 + $0x40] sm:$0xf]
    %v111 = vld [vmem:[#allocation2 + $0x44] sm:$0xf]
    %v112 = vld [vmem:[#allocation2 + $0x48] sm:$0xf]
    %v113 = vld [vmem:[#allocation2 + $0x4c] sm:$0xf]
    %v114 = vld [vmem:[#allocation2 + $0x50] sm:$0xf]
    %v115 = vld [vmem:[#allocation2 + $0x54] sm:$0xf]
    %v116 = vld [vmem:[#allocation2 + $0x58] sm:$0xf]
    %v117 = vld [vmem:[#allocation2 + $0x5c] sm:$0xf]
    %v118 = vld [vmem:[#allocation2 + $0x60] sm:$0xf]
    %v119 = vld [vmem:[#allocation2 + $0x64] sm:$0xf]
    %v120 = vld [vmem:[#allocation2 + $0x68] sm:$0xf]
    %v121 = vld [vmem:[#allocation2 + $0x6c] sm:$0xf]
    %v122 = vld [vmem:[#allocation2 + $0x70] sm:$0xf]
    %v123 = vld [vmem:[#allocation2 + $0x74] sm:$0xf]
    %v124 = vld [vmem:[#allocation2 + $0x78] sm:$0xf]
    %v125 = vld [vmem:[#allocation2 + $0x7c] sm:$0xf]
    %v126 = vld [vmem:[#allocation2 + $0x80] sm:$0xf]
    %v127 = vld [vmem:[#allocation2 + $0x84] sm:$0xf]
    %v128 = vld [vmem:[#allocation2 + $0x88] sm:$0xf]
    %v129 = vld [vmem:[#allocation2 + $0x8c] sm:$0xf]
    %v130 = vld [vmem:[#allocation2 + $0x90] sm:$0xf]
    %v131 = vld [vmem:[#allocation2 + $0x94] sm:$0xf]
    %v132 = vld [vmem:[#allocation2 + $0x98] sm:$0xf]
    %v133 = vld [vmem:[#allocation2 + $0x9c] sm:$0xf]
    %v134 = vld [vmem:[#allocation2 + $0xa0] sm:$0xf]
    %v135 = vld [vmem:[#allocation2 + $0xa4] sm:$0xf]
    %v136 = vld [vmem:[#allocation2 + $0xa8] sm:$0xf]
    %v137 = vld [vmem:[#allocation2 + $0xac] sm:$0xf]
    %v138 = vld [vmem:[#allocation2 + $0xb0] sm:$0xf]
    %v139 = vld [vmem:[#allocation2 + $0xb4] sm:$0xf]
    %v140 = vld [vmem:[#allocation2 + $0xb8] sm:$0xf]
    %v141 = vld [vmem:[#allocation2 + $0xbc] sm:$0xf]
    %v142 = vld [vmem:[#allocation2 + $0xc0] sm:$0xf]
    %v143 = vld [vmem:[#allocation2 + $0xc4] sm:$0xf]
    %v144 = vld [vmem:[#allocation2 + $0xc8] sm:$0xf]
    %v145 = vld [vmem:[#allocation2 + $0xcc] sm:$0xf]
    %v146 = vld [vmem:[#allocation2 + $0xd0] sm:$0xf]
    %v147 = vld [vmem:[#allocation2 + $0xd4] sm:$0xf]
    %v148 = vld [vmem:[#allocation2 + $0xd8] sm:$0xf]
    %v149 = vld [vmem:[#allocation2 + $0xdc] sm:$0xf]
    %v150 = vld [vmem:[#allocation2 + $0xe0] sm:$0xf]
    %v151 = vld [vmem:[#allocation2 + $0xe4] sm:$0xf]
    %v152 = vld [vmem:[#allocation2 + $0xe8] sm:$0xf]
    %v153 = vld [vmem:[#allocation2 + $0xec] sm:$0xf]
    %v154 = vld [vmem:[#allocation2 + $0xf0] sm:$0xf]
    %v155 = vld [vmem:[#allocation2 + $0xf4] sm:$0xf]
    %v156 = vld [vmem:[#allocation2 + $0xf8] sm:$0xf]
    %v157 = vld [vmem:[#allocation2 + $0xfc] sm:$0xf]
    %v158 = vld [vmem:[#allocation2 + $0x100] sm:$0xf]
    %v159 = vld [vmem:[#allocation2 + $0x104] sm:$0xf]
    %v160 = vld [vmem:[#allocation2 + $0x108] sm:$0xf]
    %v161 = vld [vmem:[#allocation2 + $0x10c] sm:$0xf]
    %v162 = vld [vmem:[#allocation2 + $0x110] sm:$0xf]
    %v163 = vld [vmem:[#allocation2 + $0x114] sm:$0xf]
    %v164 = vld [vmem:[#allocation2 + $0x118] sm:$0xf]
    %v165 = vld [vmem:[#allocation2 + $0x11c] sm:$0xf]
    %v166 = vld [vmem:[#allocation2 + $0x120] sm:$0xf]
    %v167 = vld [vmem:[#allocation2 + $0x124] sm:$0xf]
    %v168 = vld [vmem:[#allocation2 + $0x128] sm:$0xf]
    %v169 = vld [vmem:[#allocation2 + $0x12c] sm:$0xf]
    %v170 = vld [vmem:[#allocation2 + $0x130] sm:$0xf]
    %v171 = vld [vmem:[#allocation2 + $0x134] sm:$0xf]
    %v172 = vld [vmem:[#allocation2 + $0x138] sm:$0xf]
    %v173 = vld [vmem:[#allocation2 + $0x13c] sm:$0xf]
    %v174 = vld [vmem:[#allocation2 + $0x140] sm:$0xf]
    %v175 = vld [vmem:[#allocation2 + $0x144] sm:$0xf]
    %v176 = vld [vmem:[#allocation2 + $0x148] sm:$0xf]
    %v177 = vld [vmem:[#allocation2 + $0x14c] sm:$0xf]
    %v178 = vld [vmem:[#allocation2 + $0x150] sm:$0xf]
    %v179 = vld [vmem:[#allocation2 + $0x154] sm:$0xf]
    %v180 = vld [vmem:[#allocation2 + $0x158] sm:$0xf]
    %v181 = vld [vmem:[#allocation2 + $0x15c] sm:$0xf]
    %v182 = vld [vmem:[#allocation2 + $0x160] sm:$0xf]
    %v183 = vld [vmem:[#allocation2 + $0x164] sm:$0xf]
    %v184 = vld [vmem:[#allocation2 + $0x168] sm:$0xf]
    %v185 = vld [vmem:[#allocation2 + $0x16c] sm:$0xf]
    %v186 = vld [vmem:[#allocation2 + $0x170] sm:$0xf]
    %v187 = vld [vmem:[#allocation2 + $0x174] sm:$0xf]
    %v188 = vld [vmem:[#allocation2 + $0x178] sm:$0xf]
    %v189 = vld [vmem:[#allocation2 + $0x17c] sm:$0xf]
    %v190 = vld [vmem:[#allocation2 + $0x180] sm:$0xf]
    %v191 = vld [vmem:[#allocation2 + $0x184] sm:$0xf]
    %v192 = vld [vmem:[#allocation2 + $0x188] sm:$0xf]
    %v193 = vld [vmem:[#allocation2 + $0x18c] sm:$0xf]
    %v194 = vld [vmem:[#allocation2 + $0x190] sm:$0xf]
    %v195 = vld [vmem:[#allocation2 + $0x194] sm:$0xf]
    %v196 = vld [vmem:[#allocation2 + $0x198] sm:$0xf]
    %v197 = vld [vmem:[#allocation2 + $0x19c] sm:$0xf]
    %v198 = vld [vmem:[#allocation2 + $0x1a0] sm:$0xf]
    %v199 = vld [vmem:[#allocation2 + $0x1a4] sm:$0xf]
    %v200 = vld [vmem:[#allocation2 + $0x1a8] sm:$0xf]
    %v201 = vld [vmem:[#allocation2 + $0x1ac] sm:$0xf]
    %v202 = vld [vmem:[#allocation2 + $0x1b0] sm:$0xf]
    %v203 = vld [vmem:[#allocation2 + $0x1b4] sm:$0xf]
    %v204 = vld [vmem:[#allocation2 + $0x1b8] sm:$0xf]
    %v205 = vld [vmem:[#allocation2 + $0x1bc] sm:$0xf]
    %v206 = vld [vmem:[#allocation2 + $0x1c0] sm:$0xf]
    %v207 = vld [vmem:[#allocation2 + $0x1c4] sm:$0xf]
    %v208 = vld [vmem:[#allocation2 + $0x1c8] sm:$0xf]
    %v209 = vld [vmem:[#allocation2 + $0x1cc] sm:$0xf]
    %v210 = vld [vmem:[#allocation2 + $0x1d0] sm:$0xf]
    %v211 = vld [vmem:[#allocation2 + $0x1d4] sm:$0xf]
    %v212 = vld [vmem:[#allocation2 + $0x1d8] sm:$0xf]
    %v213 = vld [vmem:[#allocation2 + $0x1dc] sm:$0xf]
    %v214 = vld [vmem:[#allocation2 + $0x1e0] sm:$0xf]
    %v215 = vld [vmem:[#allocation2 + $0x1e4] sm:$0xf]
    %v216 = vld [vmem:[#allocation2 + $0x1e8] sm:$0xf]
    %v217 = vld [vmem:[#allocation2 + $0x1ec] sm:$0xf]
    %v218 = vld [vmem:[#allocation2 + $0x1f0] sm:$0xf]
    %v219 = vld [vmem:[#allocation2 + $0x1f4] sm:$0xf]
    %v220 = vld [vmem:[#allocation2 + $0x1f8] sm:$0xf]
    %v221 = vld [vmem:[#allocation2 + $0x1fc] sm:$0xf]
    %v222 = vld [vmem:[%s2] sm:$0x1]
    %v224 = vlaneseq
    %v225 = vshrl.u32 %v224, 7
    %v226 = vsub.s32 0, %v225
    %v227 = vrot.slane %v222, %v226
    %v357 = vunpack.c.l.b16 %v94
    %v358 = vunpack.c.l.b16 %v95
    %v359 = vunpack.c.l.b16 %v96
    %v360 = vunpack.c.l.b16 %v97
    %v361 = vunpack.c.l.b16 %v98
    %v362 = vunpack.c.l.b16 %v99
    %v363 = vunpack.c.l.b16 %v100
    %v364 = vunpack.c.l.b16 %v101
    %v365 = vunpack.c.l.b16 %v102
    %v366 = vunpack.c.l.b16 %v103
    %v367 = vunpack.c.l.b16 %v104
    %v368 = vunpack.c.l.b16 %v105
    %v369 = vunpack.c.l.b16 %v106
    %v370 = vunpack.c.l.b16 %v107
    %v371 = vunpack.c.l.b16 %v108
    %v372 = vunpack.c.l.b16 %v109
    %v373 = vunpack.c.l.b16 %v110
    %v374 = vunpack.c.l.b16 %v111
    %v375 = vunpack.c.l.b16 %v112
    %v376 = vunpack.c.l.b16 %v113
    %v377 = vunpack.c.l.b16 %v114
    %v378 = vunpack.c.l.b16 %v115
    %v379 = vunpack.c.l.b16 %v116
    %v380 = vunpack.c.l.b16 %v117
    %v381 = vunpack.c.l.b16 %v118
    %v382 = vunpack.c.l.b16 %v119
    %v383 = vunpack.c.l.b16 %v120
    %v384 = vunpack.c.l.b16 %v121
    %v385 = vunpack.c.l.b16 %v122
    %v386 = vunpack.c.l.b16 %v123
    %v387 = vunpack.c.l.b16 %v124
    %v388 = vunpack.c.l.b16 %v125
    %v389 = vunpack.c.l.b16 %v126
    %v390 = vunpack.c.l.b16 %v127
    %v391 = vunpack.c.l.b16 %v128
    %v392 = vunpack.c.l.b16 %v129
    %v393 = vunpack.c.l.b16 %v130
    %v394 = vunpack.c.l.b16 %v131
    %v395 = vunpack.c.l.b16 %v132
    %v396 = vunpack.c.l.b16 %v133
    %v397 = vunpack.c.l.b16 %v134
    %v398 = vunpack.c.l.b16 %v135
    %v399 = vunpack.c.l.b16 %v136
    %v400 = vunpack.c.l.b16 %v137
    %v401 = vunpack.c.l.b16 %v138
    %v402 = vunpack.c.l.b16 %v139
    %v403 = vunpack.c.l.b16 %v140
    %v404 = vunpack.c.l.b16 %v141
    %v405 = vunpack.c.l.b16 %v142
    %v406 = vunpack.c.l.b16 %v143
    %v407 = vunpack.c.l.b16 %v144
    %v408 = vunpack.c.l.b16 %v145
    %v409 = vunpack.c.l.b16 %v146
    %v410 = vunpack.c.l.b16 %v147
    %v411 = vunpack.c.l.b16 %v148
    %v412 = vunpack.c.l.b16 %v149
    %v413 = vunpack.c.l.b16 %v150
    %v414 = vunpack.c.l.b16 %v151
    %v415 = vunpack.c.l.b16 %v152
    %v416 = vunpack.c.l.b16 %v153
    %v417 = vunpack.c.l.b16 %v154
    %v418 = vunpack.c.l.b16 %v155
    %v419 = vunpack.c.l.b16 %v156
    %v420 = vunpack.c.l.b16 %v157
    %v421 = vunpack.c.l.b16 %v158
    %v422 = vunpack.c.l.b16 %v159
    %v423 = vunpack.c.l.b16 %v160
    %v424 = vunpack.c.l.b16 %v161
    %v425 = vunpack.c.l.b16 %v162
    %v426 = vunpack.c.l.b16 %v163
    %v427 = vunpack.c.l.b16 %v164
    %v428 = vunpack.c.l.b16 %v165
    %v429 = vunpack.c.l.b16 %v166
    %v430 = vunpack.c.l.b16 %v167
    %v431 = vunpack.c.l.b16 %v168
    %v432 = vunpack.c.l.b16 %v169
    %v433 = vunpack.c.l.b16 %v170
    %v434 = vunpack.c.l.b16 %v171
    %v435 = vunpack.c.l.b16 %v172
    %v436 = vunpack.c.l.b16 %v173
    %v437 = vunpack.c.l.b16 %v174
    %v438 = vunpack.c.l.b16 %v175
    %v439 = vunpack.c.l.b16 %v176
    %v440 = vunpack.c.l.b16 %v177
    %v441 = vunpack.c.l.b16 %v178
    %v442 = vunpack.c.l.b16 %v179
    %v443 = vunpack.c.l.b16 %v180
    %v444 = vunpack.c.l.b16 %v181
    %v445 = vunpack.c.l.b16 %v182
    %v446 = vunpack.c.l.b16 %v183
    %v447 = vunpack.c.l.b16 %v184
    %v448 = vunpack.c.l.b16 %v185
    %v449 = vunpack.c.l.b16 %v186
    %v450 = vunpack.c.l.b16 %v187
    %v451 = vunpack.c.l.b16 %v188
    %v452 = vunpack.c.l.b16 %v189
    %v453 = vunpack.c.l.b16 %v190
    %v454 = vunpack.c.l.b16 %v191
    %v455 = vunpack.c.l.b16 %v192
    %v456 = vunpack.c.l.b16 %v193
    %v457 = vunpack.c.l.b16 %v194
    %v458 = vunpack.c.l.b16 %v195
    %v459 = vunpack.c.l.b16 %v196
    %v460 = vunpack.c.l.b16 %v197
    %v461 = vunpack.c.l.b16 %v198
    %v462 = vunpack.c.l.b16 %v199
    %v463 = vunpack.c.l.b16 %v200
    %v464 = vunpack.c.l.b16 %v201
    %v465 = vunpack.c.l.b16 %v202
    %v466 = vunpack.c.l.b16 %v203
    %v467 = vunpack.c.l.b16 %v204
    %v468 = vunpack.c.l.b16 %v205
    %v469 = vunpack.c.l.b16 %v206
    %v470 = vunpack.c.l.b16 %v207
    %v471 = vunpack.c.l.b16 %v208
    %v472 = vunpack.c.l.b16 %v209
    %v473 = vunpack.c.l.b16 %v210
    %v474 = vunpack.c.l.b16 %v211
    %v475 = vunpack.c.l.b16 %v212
    %v476 = vunpack.c.l.b16 %v213
    %v477 = vunpack.c.l.b16 %v214
    %v478 = vunpack.c.l.b16 %v215
    %v479 = vunpack.c.l.b16 %v216
    %v480 = vunpack.c.l.b16 %v217
    %v481 = vunpack.c.l.b16 %v218
    %v482 = vunpack.c.l.b16 %v219
    %v483 = vunpack.c.l.b16 %v220
    %v484 = vunpack.c.l.b16 %v221
    %v485 = vpack.c.b16 %v358, %v357
    %v486 = vpack.c.b16 %v360, %v359
    %v487 = vpack.c.b16 %v362, %v361
    %v488 = vpack.c.b16 %v364, %v363
    %v489 = vpack.c.b16 %v366, %v365
    %v490 = vpack.c.b16 %v368, %v367
    %v491 = vpack.c.b16 %v370, %v369
    %v492 = vpack.c.b16 %v372, %v371
    %v493 = vpack.c.b16 %v374, %v373
    %v494 = vpack.c.b16 %v376, %v375
    %v495 = vpack.c.b16 %v378, %v377
    %v496 = vpack.c.b16 %v380, %v379
    %v497 = vpack.c.b16 %v382, %v381
    %v498 = vpack.c.b16 %v384, %v383
    %v499 = vpack.c.b16 %v386, %v385
    %v500 = vpack.c.b16 %v388, %v387
    %v501 = vpack.c.b16 %v390, %v389
    %v502 = vpack.c.b16 %v392, %v391
    %v503 = vpack.c.b16 %v394, %v393
    %v504 = vpack.c.b16 %v396, %v395
    %v505 = vpack.c.b16 %v398, %v397
    %v506 = vpack.c.b16 %v400, %v399
    %v507 = vpack.c.b16 %v402, %v401
    %v508 = vpack.c.b16 %v404, %v403
    %v509 = vpack.c.b16 %v406, %v405
    %v510 = vpack.c.b16 %v408, %v407
    %v511 = vpack.c.b16 %v410, %v409
    %v512 = vpack.c.b16 %v412, %v411
    %v513 = vpack.c.b16 %v414, %v413
    %v514 = vpack.c.b16 %v416, %v415
    %v515 = vpack.c.b16 %v418, %v417
    %v516 = vpack.c.b16 %v420, %v419
    %v517 = vpack.c.b16 %v422, %v421
    %v518 = vpack.c.b16 %v424, %v423
    %v519 = vpack.c.b16 %v426, %v425
    %v520 = vpack.c.b16 %v428, %v427
    %v521 = vpack.c.b16 %v430, %v429
    %v522 = vpack.c.b16 %v432, %v431
    %v523 = vpack.c.b16 %v434, %v433
    %v524 = vpack.c.b16 %v436, %v435
    %v525 = vpack.c.b16 %v438, %v437
    %v526 = vpack.c.b16 %v440, %v439
    %v527 = vpack.c.b16 %v442, %v441
    %v528 = vpack.c.b16 %v444, %v443
    %v529 = vpack.c.b16 %v446, %v445
    %v530 = vpack.c.b16 %v448, %v447
    %v531 = vpack.c.b16 %v450, %v449
    %v532 = vpack.c.b16 %v452, %v451
    %v533 = vpack.c.b16 %v454, %v453
    %v534 = vpack.c.b16 %v456, %v455
    %v535 = vpack.c.b16 %v458, %v457
    %v536 = vpack.c.b16 %v460, %v459
    %v537 = vpack.c.b16 %v462, %v461
    %v538 = vpack.c.b16 %v464, %v463
    %v539 = vpack.c.b16 %v466, %v465
    %v540 = vpack.c.b16 %v468, %v467
    %v541 = vpack.c.b16 %v470, %v469
    %v542 = vpack.c.b16 %v472, %v471
    %v543 = vpack.c.b16 %v474, %v473
    %v544 = vpack.c.b16 %v476, %v475
    %v545 = vpack.c.b16 %v478, %v477
    %v546 = vpack.c.b16 %v480, %v479
    %v547 = vpack.c.b16 %v482, %v481
    %v548 = vpack.c.b16 %v484, %v483
    %613 = vmatprep.subr.bf16.mxu0 0
    %614 = vmatpush1.bf16.msra.mxu0 %v492
    %615 = vmatprep.subr.bf16.mxu0 0
    %616 = vmatpush1.bf16.msra.mxu0 %v491
    %617 = vmatprep.subr.bf16.mxu0 0
    %618 = vmatpush1.bf16.msra.mxu0 %v490
    %619 = vmatprep.subr.bf16.mxu0 0
    %620 = vmatpush1.bf16.msra.mxu0 %v489
    %621 = vmatprep.subr.bf16.mxu0 0
    %622 = vmatpush1.bf16.msra.mxu0 %v488
    %623 = vmatprep.subr.bf16.mxu0 0
    %624 = vmatpush1.bf16.msra.mxu0 %v487
    %625 = vmatprep.subr.bf16.mxu0 0
    %626 = vmatpush1.bf16.msra.mxu0 %v486
    %627 = vmatprep.subr.bf16.mxu0 0
    %628 = vmatpush1.bf16.msra.mxu0 %v485
    %629 = vmatprep.subr.bf16.mxu0 0
    %630 = vmatpush2.bf16.msra.mxu0 %v500
    %631 = vmatprep.subr.bf16.mxu0 0
    %632 = vmatpush2.bf16.msra.mxu0 %v499
    %633 = vmatprep.subr.bf16.mxu0 0
    %634 = vmatpush2.bf16.msra.mxu0 %v498
    %635 = vmatprep.subr.bf16.mxu0 0
    %636 = vmatpush2.bf16.msra.mxu0 %v497
    %637 = vmatprep.subr.bf16.mxu0 0
    %638 = vmatpush2.bf16.msra.mxu0 %v496
    %639 = vmatprep.subr.bf16.mxu0 0
    %640 = vmatpush2.bf16.msra.mxu0 %v495
    %641 = vmatprep.subr.bf16.mxu0 0
    %642 = vmatpush2.bf16.msra.mxu0 %v494
    %643 = vmatprep.subr.bf16.mxu0 0
    %644 = vmatpush2.bf16.msra.mxu0 %v493
    %645 = vmatprep.mubr.bf16.mxu0 %v51
    %646 = vmatmul.mubr.bf16.gmra.mxu0 %v44
    %v647 = vpop.f32.mrf.mxu0
    %v648 = vadd.f32 %v227, %v647
    %v649 = vpop.f32.mrf.mxu0
    %v650 = vpop.f32.mrf.mxu0
    %v651 = vpop.f32.mrf.mxu0
    %652 = vdwg.mxu0
    %653 = vmatprep.subr.bf16.mxu0 0
    %654 = vmatpush1.bf16.msra.mxu0 %v508
    %655 = vmatprep.subr.bf16.mxu0 0
    %656 = vmatpush1.bf16.msra.mxu0 %v507
    %657 = vmatprep.subr.bf16.mxu0 0
    %658 = vmatpush1.bf16.msra.mxu0 %v506
    %659 = vmatprep.subr.bf16.mxu0 0
    %660 = vmatpush1.bf16.msra.mxu0 %v505
    %661 = vmatprep.subr.bf16.mxu0 0
    %662 = vmatpush1.bf16.msra.mxu0 %v504
    %663 = vmatprep.subr.bf16.mxu0 0
    %664 = vmatpush1.bf16.msra.mxu0 %v503
    %665 = vmatprep.subr.bf16.mxu0 0
    %666 = vmatpush1.bf16.msra.mxu0 %v502
    %667 = vmatprep.subr.bf16.mxu0 0
    %668 = vmatpush1.bf16.msra.mxu0 %v501
    %669 = vmatprep.subr.bf16.mxu0 0
    %670 = vmatpush2.bf16.msra.mxu0 %v516
    %671 = vmatprep.subr.bf16.mxu0 0
    %672 = vmatpush2.bf16.msra.mxu0 %v515
    %673 = vmatprep.subr.bf16.mxu0 0
    %674 = vmatpush2.bf16.msra.mxu0 %v514
    %675 = vmatprep.subr.bf16.mxu0 0
    %676 = vmatpush2.bf16.msra.mxu0 %v513
    %677 = vmatprep.subr.bf16.mxu0 0
    %678 = vmatpush2.bf16.msra.mxu0 %v512
    %679 = vmatprep.subr.bf16.mxu0 0
    %680 = vmatpush2.bf16.msra.mxu0 %v511
    %681 = vmatprep.subr.bf16.mxu0 0
    %682 = vmatpush2.bf16.msra.mxu0 %v510
    %683 = vmatprep.subr.bf16.mxu0 0
    %684 = vmatpush2.bf16.msra.mxu0 %v509
    %685 = vmatprep.mubr.bf16.mxu0 %v65
    %686 = vmatmul.mubr.bf16.gmra.mxu0 %v58
    %v687 = vpop.f32.mrf.mxu0
    %v688 = vadd.f32 %v648, %v687
    %v689 = vpop.f32.mrf.mxu0
    %v690 = vpop.f32.mrf.mxu0
    %v691 = vpop.f32.mrf.mxu0
    %692 = vdwg.mxu0
    %693 = vmatprep.subr.bf16.mxu0 0
    %694 = vmatpush1.bf16.msra.mxu0 %v524
    %695 = vmatprep.subr.bf16.mxu0 0
    %696 = vmatpush1.bf16.msra.mxu0 %v523
    %697 = vmatprep.subr.bf16.mxu0 0
    %698 = vmatpush1.bf16.msra.mxu0 %v522
    %699 = vmatprep.subr.bf16.mxu0 0
    %700 = vmatpush1.bf16.msra.mxu0 %v521
    %701 = vmatprep.subr.bf16.mxu0 0
    %702 = vmatpush1.bf16.msra.mxu0 %v520
    %703 = vmatprep.subr.bf16.mxu0 0
    %704 = vmatpush1.bf16.msra.mxu0 %v519
    %705 = vmatprep.subr.bf16.mxu0 0
    %706 = vmatpush1.bf16.msra.mxu0 %v518
    %707 = vmatprep.subr.bf16.mxu0 0
    %708 = vmatpush1.bf16.msra.mxu0 %v517
    %709 = vmatprep.subr.bf16.mxu0 0
    %710 = vmatpush2.bf16.msra.mxu0 %v532
    %711 = vmatprep.subr.bf16.mxu0 0
    %712 = vmatpush2.bf16.msra.mxu0 %v531
    %713 = vmatprep.subr.bf16.mxu0 0
    %714 = vmatpush2.bf16.msra.mxu0 %v530
    %715 = vmatprep.subr.bf16.mxu0 0
    %716 = vmatpush2.bf16.msra.mxu0 %v529
    %717 = vmatprep.subr.bf16.mxu0 0
    %718 = vmatpush2.bf16.msra.mxu0 %v528
    %719 = vmatprep.subr.bf16.mxu0 0
    %720 = vmatpush2.bf16.msra.mxu0 %v527
    %721 = vmatprep.subr.bf16.mxu0 0
    %722 = vmatpush2.bf16.msra.mxu0 %v526
    %723 = vmatprep.subr.bf16.mxu0 0
    %724 = vmatpush2.bf16.msra.mxu0 %v525
    %725 = vmatprep.mubr.bf16.mxu0 %v79
    %726 = vmatmul.mubr.bf16.gmra.mxu0 %v72
    %v727 = vpop.f32.mrf.mxu0
    %v728 = vadd.f32 %v688, %v727
    %v729 = vpop.f32.mrf.mxu0
    %v730 = vpop.f32.mrf.mxu0
    %v731 = vpop.f32.mrf.mxu0
    %732 = vdwg.mxu0
    %733 = vmatprep.subr.bf16.mxu0 0
    %734 = vmatpush1.bf16.msra.mxu0 %v540
    %735 = vmatprep.subr.bf16.mxu0 0
    %736 = vmatpush1.bf16.msra.mxu0 %v539
    %737 = vmatprep.subr.bf16.mxu0 0
    %738 = vmatpush1.bf16.msra.mxu0 %v538
    %739 = vmatprep.subr.bf16.mxu0 0
    %740 = vmatpush1.bf16.msra.mxu0 %v537
    %741 = vmatprep.subr.bf16.mxu0 0
    %742 = vmatpush1.bf16.msra.mxu0 %v536
    %743 = vmatprep.subr.bf16.mxu0 0
    %744 = vmatpush1.bf16.msra.mxu0 %v535
    %745 = vmatprep.subr.bf16.mxu0 0
    %746 = vmatpush1.bf16.msra.mxu0 %v534
    %747 = vmatprep.subr.bf16.mxu0 0
    %748 = vmatpush1.bf16.msra.mxu0 %v533
    %749 = vmatprep.subr.bf16.mxu0 0
    %750 = vmatpush2.bf16.msra.mxu0 %v548
    %751 = vmatprep.subr.bf16.mxu0 0
    %752 = vmatpush2.bf16.msra.mxu0 %v547
    %753 = vmatprep.subr.bf16.mxu0 0
    %754 = vmatpush2.bf16.msra.mxu0 %v546
    %755 = vmatprep.subr.bf16.mxu0 0
    %756 = vmatpush2.bf16.msra.mxu0 %v545
    %757 = vmatprep.subr.bf16.mxu0 0
    %758 = vmatpush2.bf16.msra.mxu0 %v544
    %759 = vmatprep.subr.bf16.mxu0 0
    %760 = vmatpush2.bf16.msra.mxu0 %v543
    %761 = vmatprep.subr.bf16.mxu0 0
    %762 = vmatpush2.bf16.msra.mxu0 %v542
    %763 = vmatprep.subr.bf16.mxu0 0
    %764 = vmatpush2.bf16.msra.mxu0 %v541
    %765 = vmatprep.mubr.bf16.mxu0 %v93
    %766 = vmatmul.mubr.bf16.gmra.mxu0 %v86
    %v767 = vpop.f32.mrf.mxu0
    %v768 = vadd.f32 %v728, %v767
    %v769 = vpop.f32.mrf.mxu0
    %v770 = vpop.f32.mrf.mxu0
    %v771 = vpop.f32.mrf.mxu0
    %772 = vdwg.mxu0
    %v773 = vmax.f32 %v768, 0.0
    %v774 = vpack.c.bf16 %v773, %v773
    %v775 = vld [vmem:[%s3] sm:$0xf]
    %v776 = vld [vmem:[%s3 + $0x4] sm:$0xf]
    %v777 = vld [vmem:[%s3 + $0x8] sm:$0xf]
    %v778 = vld [vmem:[%s3 + $0xc] sm:$0xf]
    %v779 = vld [vmem:[%s3 + $0x10] sm:$0xf]
    %v780 = vld [vmem:[%s3 + $0x14] sm:$0xf]
    %v781 = vld [vmem:[%s3 + $0x18] sm:$0xf]
    %v782 = vld [vmem:[%s3 + $0x1c] sm:$0xf]
    %v783 = vld [vmem:[%s3 + $0x20] sm:$0xf]
    %v784 = vld [vmem:[%s3 + $0x24] sm:$0xf]
    %v785 = vld [vmem:[%s3 + $0x28] sm:$0xf]
    %v786 = vld [vmem:[%s3 + $0x2c] sm:$0xf]
    %v787 = vld [vmem:[%s3 + $0x30] sm:$0xf]
    %v788 = vld [vmem:[%s3 + $0x34] sm:$0xf]
    %v789 = vld [vmem:[%s3 + $0x38] sm:$0xf]
    %v790 = vld [vmem:[%s3 + $0x3c] sm:$0xf]
    %v791 = vld [vmem:[%s4] sm:$0x1]
    %v793 = vlaneseq
    %v794 = vshrl.u32 %v793, 7
    %v795 = vsub.s32 0, %v794
    %v796 = vrot.slane %v791, %v795
    %v814 = vunpack.c.l.b16 %v775
    %v815 = vunpack.c.l.b16 %v776
    %v816 = vunpack.c.l.b16 %v777
    %v817 = vunpack.c.l.b16 %v778
    %v818 = vunpack.c.l.b16 %v779
    %v819 = vunpack.c.l.b16 %v780
    %v820 = vunpack.c.l.b16 %v781
    %v821 = vunpack.c.l.b16 %v782
    %v822 = vunpack.c.l.b16 %v783
    %v823 = vunpack.c.l.b16 %v784
    %v824 = vunpack.c.l.b16 %v785
    %v825 = vunpack.c.l.b16 %v786
    %v826 = vunpack.c.l.b16 %v787
    %v827 = vunpack.c.l.b16 %v788
    %v828 = vunpack.c.l.b16 %v789
    %v829 = vunpack.c.l.b16 %v790
    %v830 = vpack.c.b16 %v815, %v814
    %v831 = vpack.c.b16 %v817, %v816
    %v832 = vpack.c.b16 %v819, %v818
    %v833 = vpack.c.b16 %v821, %v820
    %v834 = vpack.c.b16 %v823, %v822
    %v835 = vpack.c.b16 %v825, %v824
    %v836 = vpack.c.b16 %v827, %v826
    %v837 = vpack.c.b16 %v829, %v828
    %846 = vmatprep.subr.bf16.mxu0 0
    %847 = vmatpush1.bf16.msra.mxu0 %v837
    %848 = vmatprep.subr.bf16.mxu0 0
    %849 = vmatpush1.bf16.msra.mxu0 %v836
    %850 = vmatprep.subr.bf16.mxu0 0
    %851 = vmatpush1.bf16.msra.mxu0 %v835
    %852 = vmatprep.subr.bf16.mxu0 0
    %853 = vmatpush1.bf16.msra.mxu0 %v834
    %854 = vmatprep.subr.bf16.mxu0 0
    %855 = vmatpush1.bf16.msra.mxu0 %v833
    %856 = vmatprep.subr.bf16.mxu0 0
    %857 = vmatpush1.bf16.msra.mxu0 %v832
    %858 = vmatprep.subr.bf16.mxu0 0
    %859 = vmatpush1.bf16.msra.mxu0 %v831
    %860 = vmatprep.subr.bf16.mxu0 0
    %861 = vmatpush1.bf16.msra.mxu0 %v830
    %862 = vmatprep.subr.bf16.mxu0 0
    %863 = vmatpush2.bf16.msra.mxu0 0
    %864 = vmatprep.subr.bf16.mxu0 0
    %865 = vmatpush2.bf16.msra.mxu0 0
    %866 = vmatprep.subr.bf16.mxu0 0
    %867 = vmatpush2.bf16.msra.mxu0 0
    %868 = vmatprep.subr.bf16.mxu0 0
    %869 = vmatpush2.bf16.msra.mxu0 0
    %870 = vmatprep.subr.bf16.mxu0 0
    %871 = vmatpush2.bf16.msra.mxu0 0
    %872 = vmatprep.subr.bf16.mxu0 0
    %873 = vmatpush2.bf16.msra.mxu0 0
    %874 = vmatprep.subr.bf16.mxu0 0
    %875 = vmatpush2.bf16.msra.mxu0 0
    %876 = vmatprep.subr.bf16.mxu0 0
    %877 = vmatpush2.bf16.msra.mxu0 0
    %878 = vmatprep.mubr.bf16.mxu0 0
    %879 = vmatmul.mubr.bf16.gmra.mxu0 %v774
    %v880 = vpop.f32.mrf.mxu0
    %v881 = vadd.f32 %v796, %v880
    %v882 = vpop.f32.mrf.mxu0
    %v883 = vpop.f32.mrf.mxu0
    %v884 = vpop.f32.mrf.mxu0
    %885 = vdwg.mxu0
    %vm886 = vcmask 15360
    %887 = vst.msk [vmem:[%s5] sm:$0xff] %vm886, %v881
    // Predicated region
    $region26: #{tpu_custom_call.1} parent=1 // pred_check
      _
    $region27: #{tpu_custom_call.1} parent=1 // pred_check_branch
      %889 = sbr.rel (0) target = $region29
    $region28: #{tpu_custom_call.1} parent=1 // pred_region
      _
    $region29: #{tpu_custom_call.1} parent=1 // pred_fallthru
      _
    // Predicated region
    $region30: #{tpu_custom_call.1} parent=1 // pred_check
      _
    $region31: #{tpu_custom_call.1} parent=1 // pred_check_branch
      %891 = sbr.rel (0) target = $region33
    $region32: #{tpu_custom_call.1} parent=1 // pred_region
      _
    $region33: #{tpu_custom_call.1} parent=1 // pred_fallthru
      _
    %892 = vsyncpa [#allocation3], 1

</llo_original>
